<compile_context>
chip_gen: v7x
topology: tpu7x:2x2x1
jax: 0.10.0
libtpu: 0.0.40
codegen_flags: <defaults>
</compile_context>

<pallas_src>
import functools
import numpy as np
import jax
import jax.numpy as jnp
from jax.experimental import pallas as pl
from jax.experimental.pallas import tpu as pltpu


DAYS = 10
STRIDE = 10
BN_EPS = 1e-5
MAX_TILE_B = 1024   # windows per grid step (multiple of 128). Per-step VMEM is
                    # ~2*(TILE_B*days*C + TILE_B*F)*4 bytes -- well inside v7x's
                    # 64 MiB and trivially inside v5e/v6e.


def _feature_kernel(xw_ref, out_ref, stats_ref, *, total_b):
    """Per-window factors + per-tile BN partial stats.

    xw_ref:    (days, C, TILE_B)  input windows (lane-dense)
    out_ref:   (F, TILE_B)        factor rows (lane-dense, full-width stores)
    stats_ref: (1, F, 2)          per-tile [sum, centered sum-of-squares] per feature
    """
    xw = xw_ref[...].astype(jnp.float32)
    d, C, tile_b = xw.shape
    P = C * (C - 1) // 2
    inv_dm1 = 1.0 / float(d - 1)

    mean = jnp.mean(xw, axis=0)                          # (C, B)   TS_Mean
    xc = xw - mean[None]                                 # (d, C, B)
    var = jnp.sum(xc * xc, axis=0) * inv_dm1             # (C, B)   unbiased
    inv_std = jax.lax.rsqrt(var)                         # exact rsqrt (EUP), reused
    std = jnp.sqrt(var)                                  # TS_Stddev

    # TS_Corr / TS_Cov: vectorized over j for each i (row-major i<j pair order),
    # one contiguous sublane-block store per (group, feature-kind).
    p = 0
    for i in range(C - 1):
        k = C - 1 - i
        cov_blk = jnp.sum(xc[:, i + 1:, :] * xc[:, i:i + 1, :], axis=0) * inv_dm1   # (k, B)
        corr_blk = cov_blk * (inv_std[i + 1:, :] * inv_std[i:i + 1, :])
        out_ref[p:p + k, :] = corr_blk
        out_ref[P + p:P + p + k, :] = cov_blk
        p += k

    # Per-channel feature groups, contiguous sublane ranges (same order as torch.cat).
    out_ref[2 * P:2 * P + C, :] = std
    out_ref[2 * P + C:2 * P + 2 * C, :] = mean * inv_std                  # TS_Zscore
    out_ref[2 * P + 2 * C:2 * P + 3 * C, :] = xw[d - 1] / xw[0] - 1.0     # TS_Return

    # TS_Decaylinear: statically unrolled weighted sum (weights 1..d, newest largest).
    wsum = 2.0 / (d * (d + 1))
    decay = xw[0] * (1.0 * wsum)
    for kk in range(1, d):
        decay = decay + xw[kk] * (float(kk + 1) * wsum)
    out_ref[2 * P + 3 * C:2 * P + 4 * C, :] = decay

    out_ref[2 * P + 4 * C:2 * P + 5 * C, :] = mean                        # TS_Mean

    # --- per-tile BatchNorm partial statistics (centered => numerically robust) ---
    # Read the tile back from VMEM (cheap; no extra HBM traffic), mask padded lanes.
    blk = out_ref[...]                                                    # (F, tile_b)
    lane = jax.lax.broadcasted_iota(jnp.int32, (1, tile_b), 1)
    glane = lane + pl.program_id(0) * tile_b
    mask = glane < total_b                                                # (1, tile_b)
    n_t = jnp.minimum(tile_b, total_b - pl.program_id(0) * tile_b).astype(jnp.float32)
    s1 = jnp.sum(jnp.where(mask, blk, 0.0), axis=1, keepdims=True)        # (F, 1)
    m_t = s1 / n_t
    cent = jnp.where(mask, blk - m_t, 0.0)
    m2 = jnp.sum(cent * cent, axis=1, keepdims=True)                      # (F, 1)
    stats_ref[0] = jnp.concatenate([s1, m2], axis=1)                      # (F, 2)


def factor_extraction(x, gamma, beta, *, days=DAYS, stride=STRIDE,
                      eps=BN_EPS, max_tile_b=MAX_TILE_B):
    """x: (N, C, T) float -> (N, T//stride, F) float32, F = C*(C-1) + 5*C."""
    N, C, T = x.shape
    assert days == stride and T % stride == 0, "non-overlapping windows required"
    Tp = T // stride
    P = C * (C - 1) // 2
    F = 2 * P + 5 * C
    B = N * Tp

    # Lane-dense glue (single XLA transpose): (N,C,T) -> (N,C,T',d) -> (d,C,N,T') -> (d,C,B)
    # TODO(synk): if the upstream producer could emit (d, C, B) (or bf16) directly, this
    # HBM pass / half of it would disappear; kept in f32 to preserve 1e-4 accuracy.
    xw = (x.astype(jnp.float32)
           .reshape(N, C, Tp, days)
           .transpose(3, 1, 0, 2)
           .reshape(days, C, B))

    # Tile the window axis (lanes). max_tile_b is a multiple of 128, so whenever the
    # grid has >1 step the block lane-dim is 128-aligned; otherwise one full-size block.
    tile_b = B if B <= max_tile_b else max_tile_b
    num_tiles = pl.cdiv(B, tile_b)
    B_pad = num_tiles * tile_b
    if B_pad != B:
        # edge-replicate so padded lanes stay finite (TS_Return divide); padded lanes
        # are masked out of the in-kernel BN partial sums and sliced off the output.
        xw = jnp.pad(xw, ((0, 0), (0, 0), (0, B_pad - B)), mode="edge")

    cparams = pltpu.CompilerParams(
        dimension_semantics=("parallel",),          # shards B-tiles across TCs on v7x
        vmem_limit_bytes=32 * 1024 * 1024,
    )
    cost = pl.CostEstimate(
        flops=2 * B_pad * days * (P + 4 * C),
        transcendentals=2 * B_pad * C,
        bytes_accessed=B_pad * (days * C + F) * 4,
    )

    feats, stats = pl.pallas_call(
        functools.partial(_feature_kernel, total_b=B),
        out_shape=(jax.ShapeDtypeStruct((F, B_pad), jnp.float32),
                   jax.ShapeDtypeStruct((num_tiles, F, 2), jnp.float32)),
        grid=(num_tiles,),
        in_specs=[pl.BlockSpec((days, C, tile_b), lambda i: (0, 0, i))],
        out_specs=[pl.BlockSpec((F, tile_b), lambda i: (0, i)),
                   pl.BlockSpec((1, F, 2), lambda i: (i, 0, 0))],
        compiler_params=cparams,
        cost_estimate=cost,
    )(xw)

    # Training-mode BatchNorm1d: combine per-tile partial stats (Chan parallel-variance,
    # exact and cancellation-free) into global per-feature mean / biased variance.
    counts = jnp.asarray(
        np.minimum(tile_b, B - np.arange(num_tiles) * tile_b), dtype=jnp.float32)[:, None]
    s1 = stats[..., 0]                                  # (num_tiles, F)
    m2 = stats[..., 1]                                  # (num_tiles, F)
    bn_mean = jnp.sum(s1, axis=0) / B                   # (F,)
    tile_mean = s1 / counts
    bn_var = (jnp.sum(m2, axis=0)
              + jnp.sum(counts * jnp.square(tile_mean - bn_mean[None, :]), axis=0)) / B

    scale = gamma.reshape(F).astype(jnp.float32) * jax.lax.rsqrt(bn_var + eps)   # (F,)
    shift = beta.reshape(F).astype(jnp.float32) - bn_mean * scale

    # BN affine fused into the output transpose: XLA does normalize + layout in one pass,
    # so feats is written once and read once (no separate normalize kernel).
    y = feats[:, :B] * scale[:, None] + shift[:, None]
    return y.T.reshape(N, Tp, F)


def factor_extraction_ref(x, gamma, beta, *, days=DAYS, stride=STRIDE, eps=BN_EPS):
    """Pure-JAX reference (same math, no Pallas)."""
    N, C, T = x.shape
    Tp = T // stride
    xw = x.reshape(N, C, Tp, days)                      # window axis last
    mean = xw.mean(axis=3)                              # (N, C, Tp)
    xc = xw - mean[..., None]
    std = jnp.sqrt((xc ** 2).sum(axis=3) / (days - 1))
    covs, corrs = [], []
    for i in range(C):
        for j in range(i + 1, C):
            cij = (xc[:, i] * xc[:, j]).sum(axis=2) / (days - 1)   # (N, Tp)
            covs.append(cij)
            corrs.append(cij / (std[:, i] * std[:, j]))
    cov = jnp.stack(covs, axis=1)                       # (N, P, Tp)
    corr = jnp.stack(corrs, axis=1)
    zscore = mean / std
    ret = xw[..., days - 1] / xw[..., 0] - 1.0
    w = jnp.arange(1, days + 1, dtype=jnp.float32) * (2.0 / (days * (days + 1)))
    decay = (xw * w).sum(axis=3)
    feats = jnp.concatenate([corr, cov, std, zscore, ret, decay, mean], axis=1)  # (N, F, Tp)
    bn_mean = feats.mean(axis=(0, 2), keepdims=True)
    bn_var = ((feats - bn_mean) ** 2).mean(axis=(0, 2), keepdims=True)
    y = (feats - bn_mean) / jnp.sqrt(bn_var + eps)
    y = y * gamma[None, :, None] + beta[None, :, None]
    return jnp.transpose(y, (0, 2, 1))                  # (N, Tp, F)


if __name__ == "__main__":
    key = jax.random.PRNGKey(0)
    k1, k2, k3, k4 = jax.random.split(key, 4)

    # ---- test 1: module-default shapes (batch=2, in_features=4, time_length=30) ----
    N, C, T = 2, 4, 30
    P = C * (C - 1) // 2
    F = 2 * P + 5 * C                                    # out_features = 32
    # shift away from zero so TS_Return (x_last / x_first - 1) is well-conditioned
    x = jax.random.normal(k1, (N, C, T), dtype=jnp.float32) + 2.0
    gamma = 1.0 + 0.1 * jax.random.normal(k2, (F,), dtype=jnp.float32)
    beta = 0.1 * jax.random.normal(k3, (F,), dtype=jnp.float32)

    out = jax.block_until_ready(factor_extraction(x, gamma, beta))
    ref = factor_extraction_ref(x, gamma, beta)
    assert out.shape == (N, T // STRIDE, F), out.shape
    np.testing.assert_allclose(np.asarray(out), np.asarray(ref), rtol=1e-4, atol=1e-4)

    # ---- test 2: exercises the multi-tile + padded-lane + stat-combine path ----
    N2, C2, T2 = 2, 5, 1500
    P2 = C2 * (C2 - 1) // 2
    F2 = 2 * P2 + 5 * C2
    x2 = jax.random.normal(k4, (N2, C2, T2), dtype=jnp.float32) + 3.0
    gamma2 = jnp.ones((F2,), jnp.float32)                # nn.BatchNorm1d default init
    beta2 = jnp.zeros((F2,), jnp.float32)

    out2 = jax.block_until_ready(factor_extraction(x2, gamma2, beta2, max_tile_b=128))
    ref2 = factor_extraction_ref(x2, gamma2, beta2)
    assert out2.shape == (N2, T2 // STRIDE, F2), out2.shape
    np.testing.assert_allclose(np.asarray(out2), np.asarray(ref2), rtol=1e-4, atol=1e-4)

    print("KERNEL_OK")
</pallas_src>

<mosaic_0001>
module attributes {stable_mosaic.version = 11 : i64} {
  func.func @_feature_kernel(%arg0: i32, %arg1: memref<10x4x6xf32, #tpu.memory_space<vmem>>, %arg2: memref<32x6xf32, #tpu.memory_space<vmem>>, %arg3: memref<1x32x2xf32, #tpu.memory_space<vmem>>) attributes {dimension_semantics = [#tpu.dimension_semantics<parallel>], iteration_bounds = array<i64: 1>, scalar_prefetch = 0 : i64, scratch_operands = 0 : i64, tpu.core_type = #tpu.core_type<tc>, window_params = [{transform_indices = @transform_0, window_bounds = array<i64: 10, 4, 6>}, {transform_indices = @transform_1, window_bounds = array<i64: 32, 6>}, {transform_indices = @transform_2, window_bounds = array<i64: 1, 32, 2>}]} {
    %c0 = arith.constant 0 : index
    %c0_0 = arith.constant 0 : index
    %c0_1 = arith.constant 0 : index
    %0 = vector.load %arg1[%c0, %c0_0, %c0_1] : memref<10x4x6xf32, #tpu.memory_space<vmem>>, vector<10x4x6xf32>
    %cst = arith.constant dense<0.000000e+00> : vector<4x6xf32>
    %1 = vector.multi_reduction <add>, %0, %cst [0] : vector<10x4x6xf32> to vector<4x6xf32>
    %cst_2 = arith.constant 1.000000e+01 : f32
    %2 = vector.broadcast %cst_2 : f32 to vector<4x6xf32>
    %3 = arith.divf %1, %2 : vector<4x6xf32>
    %4 = vector.shape_cast %3 : vector<4x6xf32> to vector<1x4x6xf32>
    %5 = vector.broadcast %4 : vector<1x4x6xf32> to vector<10x4x6xf32>
    %6 = arith.subf %0, %5 : vector<10x4x6xf32>
    %7 = arith.mulf %6, %6 : vector<10x4x6xf32>
    %cst_3 = arith.constant dense<0.000000e+00> : vector<4x6xf32>
    %8 = vector.multi_reduction <add>, %7, %cst_3 [0] : vector<10x4x6xf32> to vector<4x6xf32>
    %cst_4 = arith.constant 0.111111112 : f32
    %9 = vector.broadcast %cst_4 : f32 to vector<4x6xf32>
    %10 = arith.mulf %8, %9 : vector<4x6xf32>
    %11 = math.rsqrt %10 : vector<4x6xf32>
    %12 = math.sqrt %10 : vector<4x6xf32>
    %13 = vector.extract_strided_slice %6 {offsets = [0, 1, 0], sizes = [10, 3, 6], strides = [1, 1, 1]} : vector<10x4x6xf32> to vector<10x3x6xf32>
    %14 = vector.extract_strided_slice %6 {offsets = [0, 0, 0], sizes = [10, 1, 6], strides = [1, 1, 1]} : vector<10x4x6xf32> to vector<10x1x6xf32>
    %15 = vector.broadcast %14 : vector<10x1x6xf32> to vector<10x3x6xf32>
    %16 = arith.mulf %13, %15 : vector<10x3x6xf32>
    %cst_5 = arith.constant dense<0.000000e+00> : vector<3x6xf32>
    %17 = vector.multi_reduction <add>, %16, %cst_5 [0] : vector<10x3x6xf32> to vector<3x6xf32>
    %cst_6 = arith.constant 0.111111112 : f32
    %18 = vector.broadcast %cst_6 : f32 to vector<3x6xf32>
    %19 = arith.mulf %17, %18 : vector<3x6xf32>
    %20 = vector.extract_strided_slice %11 {offsets = [1, 0], sizes = [3, 6], strides = [1, 1]} : vector<4x6xf32> to vector<3x6xf32>
    %21 = vector.extract_strided_slice %11 {offsets = [0, 0], sizes = [1, 6], strides = [1, 1]} : vector<4x6xf32> to vector<1x6xf32>
    %22 = vector.broadcast %21 : vector<1x6xf32> to vector<3x6xf32>
    %23 = arith.mulf %20, %22 : vector<3x6xf32>
    %24 = arith.mulf %19, %23 : vector<3x6xf32>
    %c0_7 = arith.constant 0 : index
    %c0_8 = arith.constant 0 : index
    %25 = vector.load %arg2[%c0_7, %c0_8] : memref<32x6xf32, #tpu.memory_space<vmem>>, vector<3x6xf32>
    tpu.vector_store %arg2[%c0_7, %c0_8], %24 {strides = array<i32>} : memref<32x6xf32, #tpu.memory_space<vmem>>, vector<3x6xf32>,
    %c6 = arith.constant 6 : index
    %c0_9 = arith.constant 0 : index
    %26 = vector.load %arg2[%c6, %c0_9] : memref<32x6xf32, #tpu.memory_space<vmem>>, vector<3x6xf32>
    tpu.vector_store %arg2[%c6, %c0_9], %19 {strides = array<i32>} : memref<32x6xf32, #tpu.memory_space<vmem>>, vector<3x6xf32>,
    %27 = vector.extract_strided_slice %6 {offsets = [0, 2, 0], sizes = [10, 2, 6], strides = [1, 1, 1]} : vector<10x4x6xf32> to vector<10x2x6xf32>
    %28 = vector.extract_strided_slice %6 {offsets = [0, 1, 0], sizes = [10, 1, 6], strides = [1, 1, 1]} : vector<10x4x6xf32> to vector<10x1x6xf32>
    %29 = vector.broadcast %28 : vector<10x1x6xf32> to vector<10x2x6xf32>
    %30 = arith.mulf %27, %29 : vector<10x2x6xf32>
    %cst_10 = arith.constant dense<0.000000e+00> : vector<2x6xf32>
    %31 = vector.multi_reduction <add>, %30, %cst_10 [0] : vector<10x2x6xf32> to vector<2x6xf32>
    %cst_11 = arith.constant 0.111111112 : f32
    %32 = vector.broadcast %cst_11 : f32 to vector<2x6xf32>
    %33 = arith.mulf %31, %32 : vector<2x6xf32>
    %34 = vector.extract_strided_slice %11 {offsets = [2, 0], sizes = [2, 6], strides = [1, 1]} : vector<4x6xf32> to vector<2x6xf32>
    %35 = vector.extract_strided_slice %11 {offsets = [1, 0], sizes = [1, 6], strides = [1, 1]} : vector<4x6xf32> to vector<1x6xf32>
    %36 = vector.broadcast %35 : vector<1x6xf32> to vector<2x6xf32>
    %37 = arith.mulf %34, %36 : vector<2x6xf32>
    %38 = arith.mulf %33, %37 : vector<2x6xf32>
    %c3 = arith.constant 3 : index
    %c0_12 = arith.constant 0 : index
    %39 = vector.load %arg2[%c3, %c0_12] : memref<32x6xf32, #tpu.memory_space<vmem>>, vector<2x6xf32>
    tpu.vector_store %arg2[%c3, %c0_12], %38 {strides = array<i32>} : memref<32x6xf32, #tpu.memory_space<vmem>>, vector<2x6xf32>,
    %c9 = arith.constant 9 : index
    %c0_13 = arith.constant 0 : index
    %40 = vector.load %arg2[%c9, %c0_13] : memref<32x6xf32, #tpu.memory_space<vmem>>, vector<2x6xf32>
    tpu.vector_store %arg2[%c9, %c0_13], %33 {strides = array<i32>} : memref<32x6xf32, #tpu.memory_space<vmem>>, vector<2x6xf32>,
    %41 = vector.extract_strided_slice %6 {offsets = [0, 3, 0], sizes = [10, 1, 6], strides = [1, 1, 1]} : vector<10x4x6xf32> to vector<10x1x6xf32>
    %42 = vector.extract_strided_slice %6 {offsets = [0, 2, 0], sizes = [10, 1, 6], strides = [1, 1, 1]} : vector<10x4x6xf32> to vector<10x1x6xf32>
    %43 = arith.mulf %41, %42 : vector<10x1x6xf32>
    %cst_14 = arith.constant dense<0.000000e+00> : vector<1x6xf32>
    %44 = vector.multi_reduction <add>, %43, %cst_14 [0] : vector<10x1x6xf32> to vector<1x6xf32>
    %cst_15 = arith.constant 0.111111112 : f32
    %45 = vector.broadcast %cst_15 : f32 to vector<1x6xf32>
    %46 = arith.mulf %44, %45 : vector<1x6xf32>
    %47 = vector.extract_strided_slice %11 {offsets = [3, 0], sizes = [1, 6], strides = [1, 1]} : vector<4x6xf32> to vector<1x6xf32>
    %48 = vector.extract_strided_slice %11 {offsets = [2, 0], sizes = [1, 6], strides = [1, 1]} : vector<4x6xf32> to vector<1x6xf32>
    %49 = arith.mulf %47, %48 : vector<1x6xf32>
    %50 = arith.mulf %46, %49 : vector<1x6xf32>
    %c5 = arith.constant 5 : index
    %c0_16 = arith.constant 0 : index
    %51 = vector.load %arg2[%c5, %c0_16] : memref<32x6xf32, #tpu.memory_space<vmem>>, vector<1x6xf32>
    tpu.vector_store %arg2[%c5, %c0_16], %50 {strides = array<i32>} : memref<32x6xf32, #tpu.memory_space<vmem>>, vector<1x6xf32>,
    %c11 = arith.constant 11 : index
    %c0_17 = arith.constant 0 : index
    %52 = vector.load %arg2[%c11, %c0_17] : memref<32x6xf32, #tpu.memory_space<vmem>>, vector<1x6xf32>
    tpu.vector_store %arg2[%c11, %c0_17], %46 {strides = array<i32>} : memref<32x6xf32, #tpu.memory_space<vmem>>, vector<1x6xf32>,
    %c12 = arith.constant 12 : index
    %c0_18 = arith.constant 0 : index
    %53 = vector.load %arg2[%c12, %c0_18] : memref<32x6xf32, #tpu.memory_space<vmem>>, vector<4x6xf32>
    tpu.vector_store %arg2[%c12, %c0_18], %12 {strides = array<i32>} : memref<32x6xf32, #tpu.memory_space<vmem>>, vector<4x6xf32>,
    %54 = arith.mulf %3, %11 : vector<4x6xf32>
    %c16 = arith.constant 16 : index
    %c0_19 = arith.constant 0 : index
    %55 = vector.load %arg2[%c16, %c0_19] : memref<32x6xf32, #tpu.memory_space<vmem>>, vector<4x6xf32>
    tpu.vector_store %arg2[%c16, %c0_19], %54 {strides = array<i32>} : memref<32x6xf32, #tpu.memory_space<vmem>>, vector<4x6xf32>,
    %56 = vector.extract_strided_slice %0 {offsets = [9, 0, 0], sizes = [1, 4, 6], strides = [1, 1, 1]} : vector<10x4x6xf32> to vector<1x4x6xf32>
    %57 = vector.shape_cast %56 : vector<1x4x6xf32> to vector<4x6xf32>
    %58 = vector.extract_strided_slice %0 {offsets = [0, 0, 0], sizes = [1, 4, 6], strides = [1, 1, 1]} : vector<10x4x6xf32> to vector<1x4x6xf32>
    %59 = vector.shape_cast %58 : vector<1x4x6xf32> to vector<4x6xf32>
    %60 = arith.divf %57, %59 : vector<4x6xf32>
    %cst_20 = arith.constant 1.000000e+00 : f32
    %61 = vector.broadcast %cst_20 : f32 to vector<4x6xf32>
    %62 = arith.subf %60, %61 : vector<4x6xf32>
    %c20 = arith.constant 20 : index
    %c0_21 = arith.constant 0 : index
    %63 = vector.load %arg2[%c20, %c0_21] : memref<32x6xf32, #tpu.memory_space<vmem>>, vector<4x6xf32>
    tpu.vector_store %arg2[%c20, %c0_21], %62 {strides = array<i32>} : memref<32x6xf32, #tpu.memory_space<vmem>>, vector<4x6xf32>,
    %64 = vector.extract_strided_slice %0 {offsets = [0, 0, 0], sizes = [1, 4, 6], strides = [1, 1, 1]} : vector<10x4x6xf32> to vector<1x4x6xf32>
    %65 = vector.shape_cast %64 : vector<1x4x6xf32> to vector<4x6xf32>
    %cst_22 = arith.constant 0.0181818176 : f32
    %66 = vector.broadcast %cst_22 : f32 to vector<4x6xf32>
    %67 = arith.mulf %65, %66 : vector<4x6xf32>
    %68 = vector.extract_strided_slice %0 {offsets = [1, 0, 0], sizes = [1, 4, 6], strides = [1, 1, 1]} : vector<10x4x6xf32> to vector<1x4x6xf32>
    %69 = vector.shape_cast %68 : vector<1x4x6xf32> to vector<4x6xf32>
    %cst_23 = arith.constant 0.0363636352 : f32
    %70 = vector.broadcast %cst_23 : f32 to vector<4x6xf32>
    %71 = arith.mulf %69, %70 : vector<4x6xf32>
    %72 = arith.addf %67, %71 : vector<4x6xf32>
    %73 = vector.extract_strided_slice %0 {offsets = [2, 0, 0], sizes = [1, 4, 6], strides = [1, 1, 1]} : vector<10x4x6xf32> to vector<1x4x6xf32>
    %74 = vector.shape_cast %73 : vector<1x4x6xf32> to vector<4x6xf32>
    %cst_24 = arith.constant 0.0545454547 : f32
    %75 = vector.broadcast %cst_24 : f32 to vector<4x6xf32>
    %76 = arith.mulf %74, %75 : vector<4x6xf32>
    %77 = arith.addf %72, %76 : vector<4x6xf32>
    %78 = vector.extract_strided_slice %0 {offsets = [3, 0, 0], sizes = [1, 4, 6], strides = [1, 1, 1]} : vector<10x4x6xf32> to vector<1x4x6xf32>
    %79 = vector.shape_cast %78 : vector<1x4x6xf32> to vector<4x6xf32>
    %cst_25 = arith.constant 0.0727272704 : f32
    %80 = vector.broadcast %cst_25 : f32 to vector<4x6xf32>
    %81 = arith.mulf %79, %80 : vector<4x6xf32>
    %82 = arith.addf %77, %81 : vector<4x6xf32>
    %83 = vector.extract_strided_slice %0 {offsets = [4, 0, 0], sizes = [1, 4, 6], strides = [1, 1, 1]} : vector<10x4x6xf32> to vector<1x4x6xf32>
    %84 = vector.shape_cast %83 : vector<1x4x6xf32> to vector<4x6xf32>
    %cst_26 = arith.constant 0.0909090936 : f32
    %85 = vector.broadcast %cst_26 : f32 to vector<4x6xf32>
    %86 = arith.mulf %84, %85 : vector<4x6xf32>
    %87 = arith.addf %82, %86 : vector<4x6xf32>
    %88 = vector.extract_strided_slice %0 {offsets = [5, 0, 0], sizes = [1, 4, 6], strides = [1, 1, 1]} : vector<10x4x6xf32> to vector<1x4x6xf32>
    %89 = vector.shape_cast %88 : vector<1x4x6xf32> to vector<4x6xf32>
    %cst_27 = arith.constant 0.109090909 : f32
    %90 = vector.broadcast %cst_27 : f32 to vector<4x6xf32>
    %91 = arith.mulf %89, %90 : vector<4x6xf32>
    %92 = arith.addf %87, %91 : vector<4x6xf32>
    %93 = vector.extract_strided_slice %0 {offsets = [6, 0, 0], sizes = [1, 4, 6], strides = [1, 1, 1]} : vector<10x4x6xf32> to vector<1x4x6xf32>
    %94 = vector.shape_cast %93 : vector<1x4x6xf32> to vector<4x6xf32>
    %cst_28 = arith.constant 0.127272725 : f32
    %95 = vector.broadcast %cst_28 : f32 to vector<4x6xf32>
    %96 = arith.mulf %94, %95 : vector<4x6xf32>
    %97 = arith.addf %92, %96 : vector<4x6xf32>
    %98 = vector.extract_strided_slice %0 {offsets = [7, 0, 0], sizes = [1, 4, 6], strides = [1, 1, 1]} : vector<10x4x6xf32> to vector<1x4x6xf32>
    %99 = vector.shape_cast %98 : vector<1x4x6xf32> to vector<4x6xf32>
    %cst_29 = arith.constant 0.145454541 : f32
    %100 = vector.broadcast %cst_29 : f32 to vector<4x6xf32>
    %101 = arith.mulf %99, %100 : vector<4x6xf32>
    %102 = arith.addf %97, %101 : vector<4x6xf32>
    %103 = vector.extract_strided_slice %0 {offsets = [8, 0, 0], sizes = [1, 4, 6], strides = [1, 1, 1]} : vector<10x4x6xf32> to vector<1x4x6xf32>
    %104 = vector.shape_cast %103 : vector<1x4x6xf32> to vector<4x6xf32>
    %cst_30 = arith.constant 0.163636357 : f32
    %105 = vector.broadcast %cst_30 : f32 to vector<4x6xf32>
    %106 = arith.mulf %104, %105 : vector<4x6xf32>
    %107 = arith.addf %102, %106 : vector<4x6xf32>
    %108 = vector.extract_strided_slice %0 {offsets = [9, 0, 0], sizes = [1, 4, 6], strides = [1, 1, 1]} : vector<10x4x6xf32> to vector<1x4x6xf32>
    %109 = vector.shape_cast %108 : vector<1x4x6xf32> to vector<4x6xf32>
    %cst_31 = arith.constant 0.181818187 : f32
    %110 = vector.broadcast %cst_31 : f32 to vector<4x6xf32>
    %111 = arith.mulf %109, %110 : vector<4x6xf32>
    %112 = arith.addf %107, %111 : vector<4x6xf32>
    %c24 = arith.constant 24 : index
    %c0_32 = arith.constant 0 : index
    %113 = vector.load %arg2[%c24, %c0_32] : memref<32x6xf32, #tpu.memory_space<vmem>>, vector<4x6xf32>
    tpu.vector_store %arg2[%c24, %c0_32], %112 {strides = array<i32>} : memref<32x6xf32, #tpu.memory_space<vmem>>, vector<4x6xf32>,
    %c28 = arith.constant 28 : index
    %c0_33 = arith.constant 0 : index
    %114 = vector.load %arg2[%c28, %c0_33] : memref<32x6xf32, #tpu.memory_space<vmem>>, vector<4x6xf32>
    tpu.vector_store %arg2[%c28, %c0_33], %3 {strides = array<i32>} : memref<32x6xf32, #tpu.memory_space<vmem>>, vector<4x6xf32>,
    %c0_34 = arith.constant 0 : index
    %c0_35 = arith.constant 0 : index
    %115 = vector.load %arg2[%c0_34, %c0_35] : memref<32x6xf32, #tpu.memory_space<vmem>>, vector<32x6xf32>
    %116 = tpu.iota {dimensions = array<i32: 1>} : vector<1x6xi32>
    %c6_i32 = arith.constant 6 : i32
    %117 = arith.muli %arg0, %c6_i32 : i32
    %118 = vector.broadcast %117 : i32 to vector<1x6xi32>
    %119 = arith.addi %116, %118 : vector<1x6xi32>
    %c6_i32_36 = arith.constant 6 : i32
    %120 = vector.broadcast %c6_i32_36 : i32 to vector<1x6xi32>
    %121 = arith.cmpi slt, %119, %120 : vector<1x6xi32>
    %c6_i32_37 = arith.constant 6 : i32
    %122 = arith.muli %arg0, %c6_i32_37 : i32
    %c6_i32_38 = arith.constant 6 : i32
    %123 = arith.subi %c6_i32_38, %122 : i32
    %c6_i32_39 = arith.constant 6 : i32
    %124 = arith.minsi %c6_i32_39, %123 : i32
    %125 = arith.sitofp %124 : i32 to f32
    %cst_40 = arith.constant 0.000000e+00 : f32
    %126 = vector.shape_cast %121 : vector<1x6xi1> to vector<1x6xi1>
    %127 = vector.broadcast %126 : vector<1x6xi1> to vector<32x6xi1>
    %128 = vector.broadcast %cst_40 : f32 to vector<32x6xf32>
    %129 = arith.select %127, %115, %128 : vector<32x6xi1>, vector<32x6xf32>
    %cst_41 = arith.constant dense<0.000000e+00> : vector<32xf32>
    %130 = vector.multi_reduction <add>, %129, %cst_41 [1] : vector<32x6xf32> to vector<32xf32>
    %131 = vector.shape_cast %130 : vector<32xf32> to vector<32x1xf32>
    %132 = vector.broadcast %125 : f32 to vector<32x1xf32>
    %133 = arith.divf %131, %132 : vector<32x1xf32>
    %134 = vector.broadcast %133 : vector<32x1xf32> to vector<32x6xf32>
    %135 = arith.subf %115, %134 : vector<32x6xf32>
    %cst_42 = arith.constant 0.000000e+00 : f32
    %136 = vector.shape_cast %121 : vector<1x6xi1> to vector<1x6xi1>
    %137 = vector.broadcast %136 : vector<1x6xi1> to vector<32x6xi1>
    %138 = vector.broadcast %cst_42 : f32 to vector<32x6xf32>
    %139 = arith.select %137, %135, %138 : vector<32x6xi1>, vector<32x6xf32>
    %140 = arith.mulf %139, %139 : vector<32x6xf32>
    %cst_43 = arith.constant dense<0.000000e+00> : vector<32xf32>
    %141 = vector.multi_reduction <add>, %140, %cst_43 [1] : vector<32x6xf32> to vector<32xf32>
    %142 = vector.shape_cast %141 : vector<32xf32> to vector<32x1xf32>
    %143 = tpu.concatenate %131, %142 in 1 : vector<32x1xf32>, vector<32x1xf32> -> vector<32x2xf32>
    %c0_44 = arith.constant 0 : index
    %c0_45 = arith.constant 0 : index
    %c0_46 = arith.constant 0 : index
    %144 = vector.load %arg3[%c0_44, %c0_45, %c0_46] : memref<1x32x2xf32, #tpu.memory_space<vmem>>, vector<1x32x2xf32>
    %145 = vector.shape_cast %144 : vector<1x32x2xf32> to vector<32x2xf32>
    %146 = vector.shape_cast %143 : vector<32x2xf32> to vector<1x32x2xf32>
    tpu.vector_store %arg3[%c0_44, %c0_45, %c0_46], %146 {strides = array<i32>} : memref<1x32x2xf32, #tpu.memory_space<vmem>>, vector<1x32x2xf32>,
    return
  }
  func.func @transform_0(%arg0: i32) -> (i32, i32, i32) {
    %c0_i32 = arith.constant 0 : i32
    %c0_i32_0 = arith.constant 0 : i32
    %c0_i32_1 = arith.constant 0 : i32
    return %c0_i32, %c0_i32_0, %arg0 : i32, i32, i32
  }
  func.func @transform_1(%arg0: i32) -> (i32, i32) {
    %c0_i32 = arith.constant 0 : i32
    %c0_i32_0 = arith.constant 0 : i32
    return %c0_i32, %arg0 : i32, i32
  }
  func.func @transform_2(%arg0: i32) -> (i32, i32, i32) {
    %c0_i32 = arith.constant 0 : i32
    %c0_i32_0 = arith.constant 0 : i32
    %c0_i32_1 = arith.constant 0 : i32
    return %arg0, %c0_i32, %c0_i32_0 : i32, i32, i32
  }
}

</mosaic_0001>

<llo_original>
// kernel: tpu_custom_call.1
$region0: #{tpu_custom_call.1}
  #allocation0 [shape = 'u32[]', space=smem, size = 0x4, offset = 0x4, fixed_abs, tag = 'smem constant byte address 0x4 - core index']
  #allocation1 [shape = 'u32[144,128]{1,0:T(1,128)}', space=vmem, size = 0x12000, scoped, tag = 'internal scratch']
  %s0 = inlined_call_operand.vmem [shape: f32[10,4,6], index: 0, kind: input, shape index: {}]
  %s1 = inlined_call_operand.vmem [shape: f32[32,6], index: 1, kind: output, shape index: {0}]
  %s2 = inlined_call_operand.vmem [shape: f32[1,32,2], index: 2, kind: output, shape index: {1}]
  %3 = xla_tuple %s1, %s2
  %s4 = sld [smem:[#allocation0]]
  $region22: #{tpu_custom_call.1} parent=0
    _
  %s6 = ssub.s32 1, %s4
  %s7 = scalar_select 0, %s6, %s4
  // Predicated region
  $region2: #{tpu_custom_call.1} parent=0 // pred_check
    _
  $region3: #{tpu_custom_call.1} parent=0 // pred_check_branch
    %9 = sbr.rel (0) target = $region5
  $region4: #{tpu_custom_call.1} parent=0 // pred_region
    _
  $region5: #{tpu_custom_call.1} parent=0 // pred_fallthru
    _
  %v10 = vld [vmem:[%s0] sm:$0xf]
  %v11 = vld [vmem:[%s0 + $0x4] sm:$0xf]
  %v12 = vld [vmem:[%s0 + $0x8] sm:$0xf]
  %v13 = vld [vmem:[%s0 + $0xc] sm:$0xf]
  %v14 = vld [vmem:[%s0 + $0x10] sm:$0xf]
  %v15 = vld [vmem:[%s0 + $0x14] sm:$0xf]
  %v16 = vld [vmem:[%s0 + $0x18] sm:$0xf]
  %v17 = vld [vmem:[%s0 + $0x1c] sm:$0xf]
  %v18 = vld [vmem:[%s0 + $0x20] sm:$0xf]
  %v19 = vld [vmem:[%s0 + $0x24] sm:$0xf]
  %vm20 = vcmask 44032
  %v21 = vsel %vm20, %v10, 0.0
  %v22 = vsel %vm20, %v11, 0.0
  %v23 = vadd.f32 %v21, %v22
  %v24 = vsel %vm20, %v12, 0.0
  %v25 = vadd.f32 %v23, %v24
  %v26 = vsel %vm20, %v13, 0.0
  %v27 = vadd.f32 %v25, %v26
  %v28 = vsel %vm20, %v14, 0.0
  %v29 = vadd.f32 %v27, %v28
  %v30 = vsel %vm20, %v15, 0.0
  %v31 = vadd.f32 %v29, %v30
  %v32 = vsel %vm20, %v16, 0.0
  %v33 = vadd.f32 %v31, %v32
  %v34 = vsel %vm20, %v17, 0.0
  %v35 = vadd.f32 %v33, %v34
  %v36 = vsel %vm20, %v18, 0.0
  %v37 = vadd.f32 %v35, %v36
  %v38 = vsel %vm20, %v19, 0.0
  %v39 = vadd.f32 %v37, %v38
  %v40 = vrcp.pop 10.0
  %v41 = vmul.f32 %v39, %v40
  %v42 = vsub.f32 %v10, %v41
  %v43 = vsub.f32 %v11, %v41
  %v44 = vsub.f32 %v12, %v41
  %v45 = vsub.f32 %v13, %v41
  %v46 = vsub.f32 %v14, %v41
  %v47 = vsub.f32 %v15, %v41
  %v48 = vsub.f32 %v16, %v41
  %v49 = vsub.f32 %v17, %v41
  %v50 = vsub.f32 %v18, %v41
  %v51 = vsub.f32 %v19, %v41
  %v52 = vmul.f32 %v42, %v42
  %v53 = vmul.f32 %v43, %v43
  %v54 = vmul.f32 %v44, %v44
  %v55 = vmul.f32 %v45, %v45
  %v56 = vmul.f32 %v46, %v46
  %v57 = vmul.f32 %v47, %v47
  %v58 = vmul.f32 %v48, %v48
  %v59 = vmul.f32 %v49, %v49
  %v60 = vmul.f32 %v50, %v50
  %v61 = vmul.f32 %v51, %v51
  %v62 = vsel %vm20, %v52, 0.0
  %v63 = vsel %vm20, %v53, 0.0
  %v64 = vadd.f32 %v62, %v63
  %v65 = vsel %vm20, %v54, 0.0
  %v66 = vadd.f32 %v64, %v65
  %v67 = vsel %vm20, %v55, 0.0
  %v68 = vadd.f32 %v66, %v67
  %v69 = vsel %vm20, %v56, 0.0
  %v70 = vadd.f32 %v68, %v69
  %v71 = vsel %vm20, %v57, 0.0
  %v72 = vadd.f32 %v70, %v71
  %v73 = vsel %vm20, %v58, 0.0
  %v74 = vadd.f32 %v72, %v73
  %v75 = vsel %vm20, %v59, 0.0
  %v76 = vadd.f32 %v74, %v75
  %v77 = vsel %vm20, %v60, 0.0
  %v78 = vadd.f32 %v76, %v77
  %v79 = vsel %vm20, %v61, 0.0
  %v80 = vadd.f32 %v78, %v79
  %v81 = vmul.f32 %v80, 0.11111111
  %v82 = vrsqrt.pop %v81
  %v83 = vrsqrt.pop %v81
  %v84 = vmul.f32 %v81, %v83
  %vm85 = vcmp.eq.f32.partialorder %v81, inf
  %v86 = vsel %vm85, %v81, %v84
  %vm87 = vcmp.eq.f32.partialorder %v81, 0.0
  %v88 = vand.u32 %v81, 2147483648
  %v89 = vsel %vm87, %v88, %v86
  %v90 = vlaneseq
  %v91 = vshrl.u32 %v90, 7
  %v92 = vsub.s32 0, %v91
  %v93 = vrot.slane %v42, %v92
  %v94 = vlaneseq
  %v95 = vshrl.u32 %v94, 7
  %v96 = vsub.s32 0, %v95
  %v97 = vrot.slane %v43, %v96
  %v98 = vlaneseq
  %v99 = vshrl.u32 %v98, 7
  %v100 = vsub.s32 0, %v99
  %v101 = vrot.slane %v44, %v100
  %v102 = vlaneseq
  %v103 = vshrl.u32 %v102, 7
  %v104 = vsub.s32 0, %v103
  %v105 = vrot.slane %v45, %v104
  %v106 = vlaneseq
  %v107 = vshrl.u32 %v106, 7
  %v108 = vsub.s32 0, %v107
  %v109 = vrot.slane %v46, %v108
  %v110 = vlaneseq
  %v111 = vshrl.u32 %v110, 7
  %v112 = vsub.s32 0, %v111
  %v113 = vrot.slane %v47, %v112
  %v114 = vlaneseq
  %v115 = vshrl.u32 %v114, 7
  %v116 = vsub.s32 0, %v115
  %v117 = vrot.slane %v48, %v116
  %v118 = vlaneseq
  %v119 = vshrl.u32 %v118, 7
  %v120 = vsub.s32 0, %v119
  %v121 = vrot.slane %v49, %v120
  %v122 = vlaneseq
  %v123 = vshrl.u32 %v122, 7
  %v124 = vsub.s32 0, %v123
  %v125 = vrot.slane %v50, %v124
  %v126 = vlaneseq
  %v127 = vshrl.u32 %v126, 7
  %v128 = vsub.s32 0, %v127
  %v129 = vrot.slane %v51, %v128
  %v130 = vmul.f32 %v42, %v93
  %v131 = vmul.f32 %v43, %v97
  %v132 = vmul.f32 %v44, %v101
  %v133 = vmul.f32 %v45, %v105
  %v134 = vmul.f32 %v46, %v109
  %v135 = vmul.f32 %v47, %v113
  %v136 = vmul.f32 %v48, %v117
  %v137 = vmul.f32 %v49, %v121
  %v138 = vmul.f32 %v50, %v125
  %v139 = vmul.f32 %v51, %v129
  %vm140 = vcmask 44033
  %v141 = vsel %vm140, %v130, 0.0
  %v142 = vsel %vm140, %v131, 0.0
  %v143 = vadd.f32 %v141, %v142
  %v144 = vsel %vm140, %v132, 0.0
  %v145 = vadd.f32 %v143, %v144
  %v146 = vsel %vm140, %v133, 0.0
  %v147 = vadd.f32 %v145, %v146
  %v148 = vsel %vm140, %v134, 0.0
  %v149 = vadd.f32 %v147, %v148
  %v150 = vsel %vm140, %v135, 0.0
  %v151 = vadd.f32 %v149, %v150
  %v152 = vsel %vm140, %v136, 0.0
  %v153 = vadd.f32 %v151, %v152
  %v154 = vsel %vm140, %v137, 0.0
  %v155 = vadd.f32 %v153, %v154
  %v156 = vsel %vm140, %v138, 0.0
  %v157 = vadd.f32 %v155, %v156
  %v158 = vsel %vm140, %v139, 0.0
  %v159 = vadd.f32 %v157, %v158
  %v160 = vmul.f32 %v159, 0.11111111
  %v161 = vlaneseq
  %v162 = vshrl.u32 %v161, 7
  %v163 = vsub.s32 0, %v162
  %v164 = vrot.slane %v82, %v163
  %v165 = vmul.f32 %v82, %v164
  %v166 = vmul.f32 %v160, %v165
  %167 = vst.msk [vmem:[%s1 - $0x1] sm:$0xe] %vm140, %v166
  %168 = vst.msk [vmem:[%s1 + $0x5] sm:$0xe] %vm140, %v160
  %v169 = vlaneseq
  %v170 = vshrl.u32 %v169, 7
  %v171 = vsub.s32 1, %v170
  %v172 = vrot.slane %v42, %v171
  %v173 = vlaneseq
  %v174 = vshrl.u32 %v173, 7
  %v175 = vsub.s32 1, %v174
  %v176 = vrot.slane %v43, %v175
  %v177 = vlaneseq
  %v178 = vshrl.u32 %v177, 7
  %v179 = vsub.s32 1, %v178
  %v180 = vrot.slane %v44, %v179
  %v181 = vlaneseq
  %v182 = vshrl.u32 %v181, 7
  %v183 = vsub.s32 1, %v182
  %v184 = vrot.slane %v45, %v183
  %v185 = vlaneseq
  %v186 = vshrl.u32 %v185, 7
  %v187 = vsub.s32 1, %v186
  %v188 = vrot.slane %v46, %v187
  %v189 = vlaneseq
  %v190 = vshrl.u32 %v189, 7
  %v191 = vsub.s32 1, %v190
  %v192 = vrot.slane %v47, %v191
  %v193 = vlaneseq
  %v194 = vshrl.u32 %v193, 7
  %v195 = vsub.s32 1, %v194
  %v196 = vrot.slane %v48, %v195
  %v197 = vlaneseq
  %v198 = vshrl.u32 %v197, 7
  %v199 = vsub.s32 1, %v198
  %v200 = vrot.slane %v49, %v199
  %v201 = vlaneseq
  %v202 = vshrl.u32 %v201, 7
  %v203 = vsub.s32 1, %v202
  %v204 = vrot.slane %v50, %v203
  %v205 = vlaneseq
  %v206 = vshrl.u32 %v205, 7
  %v207 = vsub.s32 1, %v206
  %v208 = vrot.slane %v51, %v207
  %v209 = vmul.f32 %v42, %v172
  %v210 = vmul.f32 %v43, %v176
  %v211 = vmul.f32 %v44, %v180
  %v212 = vmul.f32 %v45, %v184
  %v213 = vmul.f32 %v46, %v188
  %v214 = vmul.f32 %v47, %v192
  %v215 = vmul.f32 %v48, %v196
  %v216 = vmul.f32 %v49, %v200
  %v217 = vmul.f32 %v50, %v204
  %v218 = vmul.f32 %v51, %v208
  %vm219 = vcmask 44034
  %v220 = vsel %vm219, %v209, 0.0
  %v221 = vsel %vm219, %v210, 0.0
  %v222 = vadd.f32 %v220, %v221
  %v223 = vsel %vm219, %v211, 0.0
  %v224 = vadd.f32 %v222, %v223
  %v225 = vsel %vm219, %v212, 0.0
  %v226 = vadd.f32 %v224, %v225
  %v227 = vsel %vm219, %v213, 0.0
  %v228 = vadd.f32 %v226, %v227
  %v229 = vsel %vm219, %v214, 0.0
  %v230 = vadd.f32 %v228, %v229
  %v231 = vsel %vm219, %v215, 0.0
  %v232 = vadd.f32 %v230, %v231
  %v233 = vsel %vm219, %v216, 0.0
  %v234 = vadd.f32 %v232, %v233
  %v235 = vsel %vm219, %v217, 0.0
  %v236 = vadd.f32 %v234, %v235
  %v237 = vsel %vm219, %v218, 0.0
  %v238 = vadd.f32 %v236, %v237
  %v239 = vmul.f32 %v238, 0.11111111
  %v240 = vlaneseq
  %v241 = vshrl.u32 %v240, 7
  %v242 = vsub.s32 1, %v241
  %v243 = vrot.slane %v82, %v242
  %v244 = vmul.f32 %v82, %v243
  %v245 = vmul.f32 %v239, %v244
  %246 = vst.msk [vmem:[%s1 + $0x1] sm:$0xc] %vm219, %v245
  %247 = vst.msk [vmem:[%s1 + $0x7] sm:$0xc] %vm219, %v239
  %v258 = vrot.slane %v42, 7
  %v259 = vrot.slane %v43, 7
  %v260 = vrot.slane %v44, 7
  %v261 = vrot.slane %v45, 7
  %v262 = vrot.slane %v46, 7
  %v263 = vrot.slane %v47, 7
  %v264 = vrot.slane %v48, 7
  %v265 = vrot.slane %v49, 7
  %v266 = vrot.slane %v50, 7
  %v267 = vrot.slane %v51, 7
  %v278 = vmul.f32 %v42, %v258
  %v279 = vmul.f32 %v43, %v259
  %v280 = vmul.f32 %v44, %v260
  %v281 = vmul.f32 %v45, %v261
  %v282 = vmul.f32 %v46, %v262
  %v283 = vmul.f32 %v47, %v263
  %v284 = vmul.f32 %v48, %v264
  %v285 = vmul.f32 %v49, %v265
  %v286 = vmul.f32 %v50, %v266
  %v287 = vmul.f32 %v51, %v267
  %vm288 = vcmask 44035
  %v289 = vsel %vm288, %v278, 0.0
  %v290 = vsel %vm288, %v279, 0.0
  %v291 = vadd.f32 %v289, %v290
  %v292 = vsel %vm288, %v280, 0.0
  %v293 = vadd.f32 %v291, %v292
  %v294 = vsel %vm288, %v281, 0.0
  %v295 = vadd.f32 %v293, %v294
  %v296 = vsel %vm288, %v282, 0.0
  %v297 = vadd.f32 %v295, %v296
  %v298 = vsel %vm288, %v283, 0.0
  %v299 = vadd.f32 %v297, %v298
  %v300 = vsel %vm288, %v284, 0.0
  %v301 = vadd.f32 %v299, %v300
  %v302 = vsel %vm288, %v285, 0.0
  %v303 = vadd.f32 %v301, %v302
  %v304 = vsel %vm288, %v286, 0.0
  %v305 = vadd.f32 %v303, %v304
  %v306 = vsel %vm288, %v287, 0.0
  %v307 = vadd.f32 %v305, %v306
  %v308 = vmul.f32 %v307, 0.11111111
  %v310 = vrot.slane %v82, 7
  %v312 = vmul.f32 %v82, %v310
  %v313 = vmul.f32 %v308, %v312
  %314 = vst.msk [vmem:[%s1 + $0x2] sm:$0x8] %vm288, %v313
  %315 = vst.msk [vmem:[%s1 + $0x8] sm:$0x8] %vm288, %v308
  %316 = vst.msk [vmem:[%s1 + $0xc] sm:$0xf] %vm20, %v89
  %v317 = vmul.f32 %v41, %v82
  %318 = vst.msk [vmem:[%s1 + $0x10] sm:$0xf] %vm20, %v317
  %v319 = vrcp.pop %v10
  %v320 = vmul.f32 %v19, %v319
  %v321 = vsub.f32 %v320, 1.0
  %322 = vst.msk [vmem:[%s1 + $0x14] sm:$0xf] %vm20, %v321
  %v323 = vmul.f32 %v10, 0.018181818
  %v324 = vmul.f32 %v11, 0.036363635
  %v325 = vadd.f32 %v323, %v324
  %v326 = vmul.f32 %v12, 0.054545455
  %v327 = vadd.f32 %v325, %v326
  %v328 = vmul.f32 %v13, 0.07272727
  %v329 = vadd.f32 %v327, %v328
  %v330 = vmul.f32 %v14, 0.09090909
  %v331 = vadd.f32 %v329, %v330
  %v332 = vmul.f32 %v15, 0.10909091
  %v333 = vadd.f32 %v331, %v332
  %v334 = vmul.f32 %v16, 0.12727273
  %v335 = vadd.f32 %v333, %v334
  %v336 = vmul.f32 %v17, 0.14545454
  %v337 = vadd.f32 %v335, %v336
  %v338 = vmul.f32 %v18, 0.16363636
  %v339 = vadd.f32 %v337, %v338
  %v340 = vmul.f32 %v19, 0.18181819
  %v341 = vadd.f32 %v339, %v340
  %342 = vst.msk [vmem:[%s1 + $0x18] sm:$0xf] %vm20, %v341
  %343 = vst.msk [vmem:[%s1 + $0x1c] sm:$0xf] %vm20, %v41
  %v344 = vld [vmem:[%s1] sm:$0xff]
  %v345 = vld [vmem:[%s1 + $0x8] sm:$0xff]
  %v346 = vld [vmem:[%s1 + $0x10] sm:$0xff]
  %v347 = vld [vmem:[%s1 + $0x18] sm:$0xff]
  %v348 = vlaneseq
  %v349 = vand.u32 %v348, 127
  %s350 = smul.u32 0, 6
  %v351 = vstv %s350
  %v352 = vadd.s32 %v349, %v351
  %vm353 = vcmp.lt.s32.totalorder %v352, 6
  %s354 = ssub.s32 6, %s350
  %p355 = scmp.lt.s32.totalorder %s354, 6
  %s356 = scalar_select %p355, %s354, 6
  %s357 = scvt.s32.f32 %s356
  %v358 = vsel %vm353, 1, 0
  %vm359 = vcmp.eq.s32.totalorder %v358, 1
  %v360 = vsel %vm359, %v344, 0.0
  %v361 = vsel %vm359, %v345, 0.0
  %v362 = vsel %vm359, %v346, 0.0
  %v363 = vsel %vm359, %v347, 0.0
  %vm364 = vcmask 48128
  %v365 = vsel %vm364, %v360, 0.0
  %366 = vadd.xlane.f32.xlu0 %v365
  %v367 = vpop.xlane.xlu0 %366
  %v368 = vsel %vm364, %v361, 0.0
  %369 = vadd.xlane.f32.xlu0 %v368
  %v370 = vpop.xlane.xlu0 %369
  %v371 = vsel %vm364, %v362, 0.0
  %372 = vadd.xlane.f32.xlu0 %v371
  %v373 = vpop.xlane.xlu0 %372
  %v374 = vsel %vm364, %v363, 0.0
  %375 = vadd.xlane.f32.xlu0 %v374
  %v376 = vpop.xlane.xlu0 %375
  %v377 = vstv %s357
  %v378 = vrcp.pop %v377
  %v379 = vmul.f32 %v367, %v378
  %v380 = vmul.f32 %v370, %v378
  %v381 = vmul.f32 %v373, %v378
  %v382 = vmul.f32 %v376, %v378
  %v383 = vsub.f32 %v344, %v379
  %v384 = vsub.f32 %v345, %v380
  %v385 = vsub.f32 %v346, %v381
  %v386 = vsub.f32 %v347, %v382
  %v387 = vsel %vm359, %v383, 0.0
  %v388 = vsel %vm359, %v384, 0.0
  %v389 = vsel %vm359, %v385, 0.0
  %v390 = vsel %vm359, %v386, 0.0
  %v391 = vmul.f32 %v387, %v387
  %v392 = vmul.f32 %v388, %v388
  %v393 = vmul.f32 %v389, %v389
  %v394 = vmul.f32 %v390, %v390
  %v395 = vsel %vm364, %v391, 0.0
  %396 = vadd.xlane.f32.xlu0 %v395
  %v397 = vpop.xlane.xlu0 %396
  %v398 = vsel %vm364, %v392, 0.0
  %399 = vadd.xlane.f32.xlu0 %v398
  %v400 = vpop.xlane.xlu0 %399
  %v401 = vsel %vm364, %v393, 0.0
  %402 = vadd.xlane.f32.xlu0 %v401
  %v403 = vpop.xlane.xlu0 %402
  %v404 = vsel %vm364, %v394, 0.0
  %405 = vadd.xlane.f32.xlu0 %v404
  %v406 = vpop.xlane.xlu0 %405
  %vm407 = vcmask 7168
  %v408 = vsel %vm407, %v367, %v397
  %v409 = vsel %vm407, %v370, %v400
  %v410 = vsel %vm407, %v373, %v403
  %v411 = vsel %vm407, %v376, %v406
  %vm412 = vcmask 15360
  %413 = vst.msk [vmem:[%s2] sm:$0xff] %vm412, %v408
  %414 = vst.msk [vmem:[%s2 + $0x8] sm:$0xff] %vm412, %v409
  %415 = vst.msk [vmem:[%s2 + $0x10] sm:$0xff] %vm412, %v410
  %416 = vst.msk [vmem:[%s2 + $0x18] sm:$0xff] %vm412, %v411
  // Predicated region
  $region6: #{tpu_custom_call.1} parent=0 // pred_check
    _
  $region7: #{tpu_custom_call.1} parent=0 // pred_check_branch
    %418 = sbr.rel (0) target = $region9
  $region8: #{tpu_custom_call.1} parent=0 // pred_region
    _
  $region9: #{tpu_custom_call.1} parent=0 // pred_fallthru
    _
  // Predicated region
  $region10: #{tpu_custom_call.1} parent=0 // pred_check
    _
  $region11: #{tpu_custom_call.1} parent=0 // pred_check_branch
    %420 = sbr.rel (0) target = $region13
  $region12: #{tpu_custom_call.1} parent=0 // pred_region
    _
  $region13: #{tpu_custom_call.1} parent=0 // pred_fallthru
    _
  // Predicated region
  $region14: #{tpu_custom_call.1} parent=0 // pred_check
    _
  $region15: #{tpu_custom_call.1} parent=0 // pred_check_branch
    %422 = sbr.rel (0) target = $region17
  $region16: #{tpu_custom_call.1} parent=0 // pred_region
    _
  $region17: #{tpu_custom_call.1} parent=0 // pred_fallthru
    _
  // Predicated region
  $region18: #{tpu_custom_call.1} parent=0 // pred_check
    _
  $region19: #{tpu_custom_call.1} parent=0 // pred_check_branch
    %424 = sbr.rel (0) target = $region21
  $region20: #{tpu_custom_call.1} parent=0 // pred_region
    _
  $region21: #{tpu_custom_call.1} parent=0 // pred_fallthru
    _

</llo_original>
